<compile_context>
chip_gen: v7x
topology: tpu7x:2x2x1
jax: 0.10.0
libtpu: 0.0.40
codegen_flags: <defaults>
</compile_context>

<pallas_src>
import functools

import jax
import jax.numpy as jnp
from jax import lax
from jax.experimental import pallas as pl
from jax.experimental.pallas import tpu as pltpu


def _round_up(x, m):
    return (x + m - 1) // m * m


def _rvq_kernel(x_ref, cbt_ref, cb_ref, e2_ref, out_ref, loss_ref, *,
                num_codebooks, n_valid, n_split, need_row_mask,
                loss_scale, dist_dtype):
    i = pl.program_id(0)
    tile_n, d = x_ref.shape
    k_pad = cb_ref.shape[1]
    rows = tile_n // n_split

    # Load row chunks (independent chains -> scheduler can overlap MXU/VPU work).
    resids, masks = [], []
    for s in range(n_split):
        xs = x_ref[s * rows:(s + 1) * rows, :].astype(jnp.float32)   # (rows, D)
        if need_row_mask:
            # Edge tile: rows >= n_valid hold unspecified data -> zero them out.
            row = i * tile_n + s * rows + lax.broadcasted_iota(
                jnp.int32, (rows, 1), 0)
            m = row < n_valid
            xs = jnp.where(m, xs, 0.0)
            masks.append(m)
        resids.append(xs)

    accs = [jnp.zeros_like(r) for r in resids]
    losses = [jnp.float32(0.0) for _ in range(n_split)]
    iota_k = lax.broadcasted_iota(jnp.int32, (rows, k_pad), 1)        # hoisted

    # num_codebooks is small and static -> unrolled Python loop.
    for c in range(num_codebooks):
        e_dk = cbt_ref[c]            # (D, Kp)  dist dtype, pre-transposed (no XLU)
        e_kd = cb_ref[c]             # (Kp, D)  f32, for the one-hot gather
        e2h = e2_ref[c]              # (1, Kp)  0.5*||e||^2, +LARGE on padded K

        for s in range(n_split):
            r = resids[s]
            # argmin_k ||r - e_k||^2 == argmin_k (0.5||e_k||^2 - r.e_k)
            xe = jnp.dot(r.astype(dist_dtype), e_dk,
                         preferred_element_type=jnp.float32)          # (rows, Kp)
            dist = e2h - xe

            # First-index tie-break (matches torch/jnp argmin).
            dmin = jnp.min(dist, axis=1, keepdims=True)
            idx = jnp.min(jnp.where(dist <= dmin, iota_k, k_pad),
                          axis=1, keepdims=True)

            # Gather codewords via one-hot matmul (MXU friendly), kept in f32.
            onehot = (iota_k == idx).astype(jnp.float32)              # (rows, Kp)
            q = jnp.dot(onehot, e_kd, preferred_element_type=jnp.float32)
            if need_row_mask:
                q = jnp.where(masks[s], q, 0.0)

            diff = q - r
            losses[s] = losses[s] + jnp.sum(diff * diff)
            accs[s] = accs[s] + q
            resids[s] = r - q

    for s in range(n_split):
        out_ref[s * rows:(s + 1) * rows, :] = accs[s].astype(out_ref.dtype)

    total = loss_scale * sum(losses)
    # Full (8,128) lane-dense tile per grid step; reduced in the wrapper.
    loss_ref[...] = jnp.full(loss_ref.shape, total, dtype=loss_ref.dtype)


def _vmem_capacity_bytes():
    # Broad except only around the hardware query (not around pallas_call):
    # fall back to a v7x-safe 64 MiB if the query is unavailable.
    try:
        return int(pltpu.get_tpu_info().vmem_capacity_bytes)
    except Exception:
        return 64 * 1024 * 1024


def residual_vector_quantize(x, codebooks, *, commitment_cost=0.25,
                             tile_n=512, dist_matmul_dtype=jnp.bfloat16):
    """x: (B, S, D) float32; codebooks: (C, K, D) float32.

    Returns (out, loss) matching ResidualVectorQuantizer.forward (value
    semantics).  dist_matmul_dtype=jnp.float32 matches the reference bitwise;
    the bf16 default can flip argmin only on near-exact ties.
    """
    B, S, D = x.shape
    C, K, Dc = codebooks.shape
    assert D == Dc
    N = B * S
    k_pad = _round_up(K, 128)

    vmem_cap = _vmem_capacity_bytes()
    budget = int(0.75 * vmem_cap)     # ~96 MiB on v5e/v6e, ~48 MiB on v7x

    # >= 2 grid tiles so both v7x TensorCores get work (no-op on v5e/v6e).
    tile_n = min(int(tile_n), _round_up(pl.cdiv(N, 2), 8))
    tile_n = max(8, _round_up(tile_n, 8))

    dist_bytes = jnp.dtype(dist_matmul_dtype).itemsize

    def _vmem_est(tn):
        io = 2 * 2 * tn * D * 4                              # x in + out, dbl-buffered
        cb = 2 * (C * k_pad * D * 4                          # gather codebook (f32)
                  + C * D * k_pad * dist_bytes               # transposed codebook
                  + C * k_pad * 4)                           # e2_half
        tmp = 8 * tn * max(D, k_pad) * 4                     # dist/onehot/acc temps
        return io + cb + tmp + (1 << 20)

    while tile_n > 128 and _vmem_est(tile_n) > budget:
        tile_n = _round_up(tile_n // 2, 8)
    # TODO(synk): if the resident codebooks alone exceed the VMEM budget (very
    # large C*K*D, mainly a v7x concern), stream codebook K-tiles with a
    # running-min argmin instead of keeping them resident.

    num_tiles = pl.cdiv(N, tile_n)
    need_row_mask = (N % tile_n) != 0
    # Two independent row halves per tile let the scheduler overlap one half's
    # matmuls with the other's argmin; only worth it for larger tiles.
    n_split = 2 if (tile_n >= 256 and tile_n % 16 == 0) else 1

    x_flat = x.reshape(N, D)
    cb_f32 = codebooks.astype(jnp.float32)
    cb_pad = jnp.zeros((C, k_pad, D), jnp.float32).at[:, :K, :].set(cb_f32)
    cbt = jnp.swapaxes(cb_pad, 1, 2).astype(dist_matmul_dtype)      # (C, D, Kp)
    # 0.5*||e||^2 (factor 2 folded); +LARGE sentinel on padded K so those
    # codewords never win the argmin.
    e2_half = jnp.full((C, 1, k_pad), 1e30, jnp.float32).at[:, 0, :K].set(
        0.5 * jnp.sum(cb_f32 * cb_f32, axis=-1))

    loss_scale = (1.0 + float(commitment_cost)) / float(N * D)

    kernel = functools.partial(
        _rvq_kernel,
        num_codebooks=C,
        n_valid=N,
        n_split=n_split,
        need_row_mask=need_row_mask,
        loss_scale=loss_scale,
        dist_dtype=dist_matmul_dtype,
    )

    vmem_limit = int(min(max(2 * _vmem_est(tile_n), 32 * 1024 * 1024),
                         int(0.85 * vmem_cap)))

    grid_spec = pltpu.PrefetchScalarGridSpec(
        num_scalar_prefetch=0,
        grid=(num_tiles,),
        in_specs=[
            pl.BlockSpec((tile_n, D), lambda i: (i, 0)),
            pl.BlockSpec((C, D, k_pad), lambda i: (0, 0, 0)),
            pl.BlockSpec((C, k_pad, D), lambda i: (0, 0, 0)),
            pl.BlockSpec((C, 1, k_pad), lambda i: (0, 0, 0)),
        ],
        out_specs=[
            pl.BlockSpec((tile_n, D), lambda i: (i, 0)),
            pl.BlockSpec((1, 8, 128), lambda i: (i, 0, 0)),
        ],
    )

    out_flat, loss_part = pl.pallas_call(
        kernel,
        out_shape=(
            jax.ShapeDtypeStruct((N, D), x.dtype),
            jax.ShapeDtypeStruct((num_tiles, 8, 128), jnp.float32),
        ),
        grid_spec=grid_spec,
        compiler_params=pltpu.CompilerParams(
            # Tiles are fully independent -> shard across v7x's 2 TensorCores.
            dimension_semantics=("parallel",),
            vmem_limit_bytes=vmem_limit,
        ),
    )(x_flat, cbt, cb_pad, e2_half)

    out = out_flat.reshape(B, S, D)
    loss = jnp.sum(loss_part[:, 0, 0])
    return out, loss


def _reference_rvq(x, codebooks, commitment_cost=0.25):
    """Pure-JAX reference mirroring the PyTorch forward (full-precision matmul)."""
    out = jnp.zeros_like(x)
    total_loss = jnp.float32(0.0)
    resid = x
    B, S, D = x.shape
    for c in range(codebooks.shape[0]):
        E = codebooks[c]
        flat = resid.reshape(B * S, D)
        d2 = (jnp.sum(flat ** 2, axis=1, keepdims=True)
              + jnp.sum(E ** 2, axis=1)[None, :]
              - 2.0 * jnp.dot(flat, E.T, precision=lax.Precision.HIGHEST))
        idx = jnp.argmin(d2, axis=1)
        q = E[idx].reshape(B, S, D)
        loss = (1.0 + commitment_cost) * jnp.mean((q - resid) ** 2)
        out = out + q
        total_loss = total_loss + loss
        resid = resid - q
    return out, total_loss


if __name__ == "__main__":
    # Small, deterministic setup consistent with the module:
    #   batch=2, seq=8, embedding_dim=32, num_codebooks=2, codebook_size=64
    B, S, D = 2, 8, 32
    C, K = 2, 64

    key = jax.random.PRNGKey(0)
    kx, kcb = jax.random.split(key)
    x = jax.random.normal(kx, (B, S, D), dtype=jnp.float32)
    # nn.init.uniform_(embedding.weight, -0.1, 0.1) per codebook
    codebooks = jax.random.uniform(kcb, (C, K, D), dtype=jnp.float32,
                                   minval=-0.1, maxval=0.1)

    ref_out, ref_loss = _reference_rvq(x, codebooks)

    # f32 distance-matmul path: parity with the reference.
    out32, loss32 = residual_vector_quantize(x, codebooks,
                                             dist_matmul_dtype=jnp.float32)
    out32 = jax.block_until_ready(out32)
    loss32 = jax.block_until_ready(loss32)
    assert out32.shape == (B, S, D)
    assert jnp.allclose(out32, ref_out, atol=1e-4, rtol=1e-4), "output mismatch (f32)"
    assert jnp.allclose(loss32, ref_loss, atol=1e-4, rtol=1e-4), "loss mismatch (f32)"

    # Default fast path (bf16 distance matmul): loss must stay very close; the
    # output may legitimately differ on near-exact argmin ties, so only sanity
    # check it.
    out_bf, loss_bf = residual_vector_quantize(x, codebooks)
    out_bf = jax.block_until_ready(out_bf)
    loss_bf = jax.block_until_ready(loss_bf)
    assert out_bf.shape == (B, S, D)
    assert bool(jnp.all(jnp.isfinite(out_bf))), "non-finite output (bf16)"
    assert jnp.allclose(loss_bf, ref_loss, atol=1e-2, rtol=1e-2), "loss mismatch (bf16)"

    # TODO(synk): backward/straight-through gradients are not implemented (forward only).
    print("KERNEL_OK")
</pallas_src>

<mosaic_0001>
module attributes {stable_mosaic.version = 11 : i64} {
  func.func @_rvq_kernel(%arg0: i32, %arg1: memref<8x32xf32, #tpu.memory_space<vmem>>, %arg2: memref<2x32x128xf32, #tpu.memory_space<vmem>>, %arg3: memref<2x128x32xf32, #tpu.memory_space<vmem>>, %arg4: memref<2x1x128xf32, #tpu.memory_space<vmem>>, %arg5: memref<8x32xf32, #tpu.memory_space<vmem>>, %arg6: memref<1x8x128xf32, #tpu.memory_space<vmem>>) attributes {dimension_semantics = [#tpu.dimension_semantics<parallel>], iteration_bounds = array<i64: 2>, scalar_prefetch = 0 : i64, scratch_operands = 0 : i64, tpu.core_type = #tpu.core_type<tc>, window_params = [{transform_indices = @transform_0, window_bounds = array<i64: 8, 32>}, {pipeline_mode = #tpu.pipeline_mode<synchronous>, transform_indices = @transform_1, window_bounds = array<i64: 2, 32, 128>}, {pipeline_mode = #tpu.pipeline_mode<synchronous>, transform_indices = @transform_2, window_bounds = array<i64: 2, 128, 32>}, {pipeline_mode = #tpu.pipeline_mode<synchronous>, transform_indices = @transform_3, window_bounds = array<i64: 2, 1, 128>}, {transform_indices = @transform_4, window_bounds = array<i64: 8, 32>}, {transform_indices = @transform_5, window_bounds = array<i64: 1, 8, 128>}]} {
    %c0 = arith.constant 0 : index
    %c0_0 = arith.constant 0 : index
    %0 = vector.load %arg1[%c0, %c0_0] : memref<8x32xf32, #tpu.memory_space<vmem>>, vector<8x32xf32>
    %cst = arith.constant 0.000000e+00 : f32
    %1 = vector.broadcast %cst : f32 to vector<8x32xf32>
    %2 = tpu.iota {dimensions = array<i32: 1>} : vector<8x128xi32>
    %c0_1 = arith.constant 0 : index
    %c0_2 = arith.constant 0 : index
    %c0_3 = arith.constant 0 : index
    %3 = vector.load %arg2[%c0_1, %c0_2, %c0_3] : memref<2x32x128xf32, #tpu.memory_space<vmem>>, vector<1x32x128xf32>
    %4 = vector.shape_cast %3 : vector<1x32x128xf32> to vector<32x128xf32>
    %c0_4 = arith.constant 0 : index
    %c0_5 = arith.constant 0 : index
    %c0_6 = arith.constant 0 : index
    %5 = vector.load %arg3[%c0_4, %c0_5, %c0_6] : memref<2x128x32xf32, #tpu.memory_space<vmem>>, vector<1x128x32xf32>
    %6 = vector.shape_cast %5 : vector<1x128x32xf32> to vector<128x32xf32>
    %c0_7 = arith.constant 0 : index
    %c0_8 = arith.constant 0 : index
    %c0_9 = arith.constant 0 : index
    %7 = vector.load %arg4[%c0_7, %c0_8, %c0_9] : memref<2x1x128xf32, #tpu.memory_space<vmem>>, vector<1x1x128xf32>
    %8 = vector.shape_cast %7 : vector<1x1x128xf32> to vector<1x128xf32>
    %cst_10 = arith.constant dense<0.000000e+00> : vector<8x128xf32>
    %9 = tpu.matmul %0, %4, %cst_10 {dimension_numbers = #tpu.dot_dimension_numbers<[1], [0], [0], [1], [0, 0, 1, 1], [], []>} : vector<8x32xf32>, vector<32x128xf32>, vector<8x128xf32> -> vector<8x128xf32>
    %10 = vector.broadcast %8 : vector<1x128xf32> to vector<8x128xf32>
    %11 = arith.subf %10, %9 : vector<8x128xf32>
    %cst_11 = arith.constant dense<0x7F800000> : vector<8xf32>
    %12 = vector.multi_reduction <minimumf>, %11, %cst_11 [1] : vector<8x128xf32> to vector<8xf32>
    %13 = vector.shape_cast %12 : vector<8xf32> to vector<8x1xf32>
    %14 = vector.broadcast %13 : vector<8x1xf32> to vector<8x128xf32>
    %15 = arith.cmpf ole, %11, %14 : vector<8x128xf32>
    %c128_i32 = arith.constant 128 : i32
    %16 = vector.broadcast %c128_i32 : i32 to vector<8x128xi32>
    %17 = arith.select %15, %2, %16 : vector<8x128xi1>, vector<8x128xi32>
    %cst_12 = arith.constant dense<2147483647> : vector<8xi32>
    %18 = vector.multi_reduction <minsi>, %17, %cst_12 [1] : vector<8x128xi32> to vector<8xi32>
    %19 = vector.shape_cast %18 : vector<8xi32> to vector<8x1xi32>
    %20 = vector.broadcast %19 : vector<8x1xi32> to vector<8x128xi32>
    %21 = arith.cmpi eq, %2, %20 : vector<8x128xi32>
    %22 = arith.extui %21 : vector<8x128xi1> to vector<8x128xi32>
    %23 = arith.sitofp %22 : vector<8x128xi32> to vector<8x128xf32>
    %cst_13 = arith.constant dense<0.000000e+00> : vector<8x32xf32>
    %24 = tpu.matmul %23, %6, %cst_13 {dimension_numbers = #tpu.dot_dimension_numbers<[1], [0], [0], [1], [0, 0, 1, 1], [], []>} : vector<8x128xf32>, vector<128x32xf32>, vector<8x32xf32> -> vector<8x32xf32>
    %25 = arith.subf %24, %0 : vector<8x32xf32>
    %26 = arith.mulf %25, %25 : vector<8x32xf32>
    %27 = vector.shape_cast %26 : vector<8x32xf32> to vector<1x8x32xf32>
    %cst_14 = arith.constant dense<0.000000e+00> : vector<1xf32>
    %28 = vector.multi_reduction <add>, %27, %cst_14 [1, 2] : vector<1x8x32xf32> to vector<1xf32>
    %29 = vector.shape_cast %28 : vector<1xf32> to vector<1x1x1xf32>
    %30 = vector.extract %29[0, 0, 0] : f32 from vector<1x1x1xf32>
    %cst_15 = arith.constant 0.000000e+00 : f32
    %31 = arith.addf %cst_15, %30 : f32
    %32 = arith.addf %1, %24 : vector<8x32xf32>
    %33 = arith.subf %0, %24 : vector<8x32xf32>
    %c1 = arith.constant 1 : index
    %c0_16 = arith.constant 0 : index
    %c0_17 = arith.constant 0 : index
    %34 = vector.load %arg2[%c1, %c0_16, %c0_17] : memref<2x32x128xf32, #tpu.memory_space<vmem>>, vector<1x32x128xf32>
    %35 = vector.shape_cast %34 : vector<1x32x128xf32> to vector<32x128xf32>
    %c1_18 = arith.constant 1 : index
    %c0_19 = arith.constant 0 : index
    %c0_20 = arith.constant 0 : index
    %36 = vector.load %arg3[%c1_18, %c0_19, %c0_20] : memref<2x128x32xf32, #tpu.memory_space<vmem>>, vector<1x128x32xf32>
    %37 = vector.shape_cast %36 : vector<1x128x32xf32> to vector<128x32xf32>
    %c1_21 = arith.constant 1 : index
    %c0_22 = arith.constant 0 : index
    %c0_23 = arith.constant 0 : index
    %38 = vector.load %arg4[%c1_21, %c0_22, %c0_23] : memref<2x1x128xf32, #tpu.memory_space<vmem>>, vector<1x1x128xf32>
    %39 = vector.shape_cast %38 : vector<1x1x128xf32> to vector<1x128xf32>
    %cst_24 = arith.constant dense<0.000000e+00> : vector<8x128xf32>
    %40 = tpu.matmul %33, %35, %cst_24 {dimension_numbers = #tpu.dot_dimension_numbers<[1], [0], [0], [1], [0, 0, 1, 1], [], []>} : vector<8x32xf32>, vector<32x128xf32>, vector<8x128xf32> -> vector<8x128xf32>
    %41 = vector.broadcast %39 : vector<1x128xf32> to vector<8x128xf32>
    %42 = arith.subf %41, %40 : vector<8x128xf32>
    %cst_25 = arith.constant dense<0x7F800000> : vector<8xf32>
    %43 = vector.multi_reduction <minimumf>, %42, %cst_25 [1] : vector<8x128xf32> to vector<8xf32>
    %44 = vector.shape_cast %43 : vector<8xf32> to vector<8x1xf32>
    %45 = vector.broadcast %44 : vector<8x1xf32> to vector<8x128xf32>
    %46 = arith.cmpf ole, %42, %45 : vector<8x128xf32>
    %c128_i32_26 = arith.constant 128 : i32
    %47 = vector.broadcast %c128_i32_26 : i32 to vector<8x128xi32>
    %48 = arith.select %46, %2, %47 : vector<8x128xi1>, vector<8x128xi32>
    %cst_27 = arith.constant dense<2147483647> : vector<8xi32>
    %49 = vector.multi_reduction <minsi>, %48, %cst_27 [1] : vector<8x128xi32> to vector<8xi32>
    %50 = vector.shape_cast %49 : vector<8xi32> to vector<8x1xi32>
    %51 = vector.broadcast %50 : vector<8x1xi32> to vector<8x128xi32>
    %52 = arith.cmpi eq, %2, %51 : vector<8x128xi32>
    %53 = arith.extui %52 : vector<8x128xi1> to vector<8x128xi32>
    %54 = arith.sitofp %53 : vector<8x128xi32> to vector<8x128xf32>
    %cst_28 = arith.constant dense<0.000000e+00> : vector<8x32xf32>
    %55 = tpu.matmul %54, %37, %cst_28 {dimension_numbers = #tpu.dot_dimension_numbers<[1], [0], [0], [1], [0, 0, 1, 1], [], []>} : vector<8x128xf32>, vector<128x32xf32>, vector<8x32xf32> -> vector<8x32xf32>
    %56 = arith.subf %55, %33 : vector<8x32xf32>
    %57 = arith.mulf %56, %56 : vector<8x32xf32>
    %58 = vector.shape_cast %57 : vector<8x32xf32> to vector<1x8x32xf32>
    %cst_29 = arith.constant dense<0.000000e+00> : vector<1xf32>
    %59 = vector.multi_reduction <add>, %58, %cst_29 [1, 2] : vector<1x8x32xf32> to vector<1xf32>
    %60 = vector.shape_cast %59 : vector<1xf32> to vector<1x1x1xf32>
    %61 = vector.extract %60[0, 0, 0] : f32 from vector<1x1x1xf32>
    %62 = arith.addf %31, %61 : f32
    %63 = arith.addf %32, %55 : vector<8x32xf32>
    %c0_30 = arith.constant 0 : index
    %c0_31 = arith.constant 0 : index
    %64 = vector.load %arg5[%c0_30, %c0_31] : memref<8x32xf32, #tpu.memory_space<vmem>>, vector<8x32xf32>
    tpu.vector_store %arg5[%c0_30, %c0_31], %63 {strides = array<i32>} : memref<8x32xf32, #tpu.memory_space<vmem>>, vector<8x32xf32>,
    %cst_32 = arith.constant 0.000000e+00 : f32
    %65 = arith.addf %cst_32, %62 : f32
    %cst_33 = arith.constant 0.00244140625 : f32
    %66 = arith.mulf %cst_33, %65 : f32
    %67 = vector.broadcast %66 : f32 to vector<1x8x128xf32>
    %c0_34 = arith.constant 0 : index
    %c0_35 = arith.constant 0 : index
    %c0_36 = arith.constant 0 : index
    %68 = vector.load %arg6[%c0_34, %c0_35, %c0_36] : memref<1x8x128xf32, #tpu.memory_space<vmem>>, vector<1x8x128xf32>
    tpu.vector_store %arg6[%c0_34, %c0_35, %c0_36], %67 {strides = array<i32>} : memref<1x8x128xf32, #tpu.memory_space<vmem>>, vector<1x8x128xf32>,
    return
  }
  func.func @transform_0(%arg0: i32) -> (i32, i32) {
    %c0_i32 = arith.constant 0 : i32
    %c0_i32_0 = arith.constant 0 : i32
    return %arg0, %c0_i32 : i32, i32
  }
  func.func @transform_1(%arg0: i32) -> (i32, i32, i32) {
    %c0_i32 = arith.constant 0 : i32
    %c0_i32_0 = arith.constant 0 : i32
    %c0_i32_1 = arith.constant 0 : i32
    %c0_i32_2 = arith.constant 0 : i32
    return %c0_i32, %c0_i32_0, %c0_i32_1 : i32, i32, i32
  }
  func.func @transform_2(%arg0: i32) -> (i32, i32, i32) {
    %c0_i32 = arith.constant 0 : i32
    %c0_i32_0 = arith.constant 0 : i32
    %c0_i32_1 = arith.constant 0 : i32
    %c0_i32_2 = arith.constant 0 : i32
    return %c0_i32, %c0_i32_0, %c0_i32_1 : i32, i32, i32
  }
  func.func @transform_3(%arg0: i32) -> (i32, i32, i32) {
    %c0_i32 = arith.constant 0 : i32
    %c0_i32_0 = arith.constant 0 : i32
    %c0_i32_1 = arith.constant 0 : i32
    %c0_i32_2 = arith.constant 0 : i32
    return %c0_i32, %c0_i32_0, %c0_i32_1 : i32, i32, i32
  }
  func.func @transform_4(%arg0: i32) -> (i32, i32) {
    %c0_i32 = arith.constant 0 : i32
    %c0_i32_0 = arith.constant 0 : i32
    return %arg0, %c0_i32 : i32, i32
  }
  func.func @transform_5(%arg0: i32) -> (i32, i32, i32) {
    %c0_i32 = arith.constant 0 : i32
    %c0_i32_0 = arith.constant 0 : i32
    %c0_i32_1 = arith.constant 0 : i32
    return %arg0, %c0_i32, %c0_i32_0 : i32, i32, i32
  }
}

</mosaic_0001>

<llo_original>
// kernel: tpu_custom_call.1
$region0: #{tpu_custom_call.1}
  #allocation0 [shape = 'u32[]', space=smem, size = 0x4, offset = 0x4, fixed_abs, tag = 'smem constant byte address 0x4 - core index']
  #allocation1 [shape = 'u32[144,128]{1,0:T(1,128)}', space=vmem, size = 0x12000, scoped, tag = 'internal scratch']
  %s0 = inlined_call_operand.vmem [shape: f32[16,32], index: 0, kind: input, shape index: {}]
  %s1 = inlined_call_operand.vmem [shape: f32[2,32,128], index: 1, kind: input, shape index: {}]
  %s2 = inlined_call_operand.vmem [shape: f32[2,128,32], index: 2, kind: input, shape index: {}]
  %s3 = inlined_call_operand.vmem [shape: f32[2,1,128], index: 3, kind: input, shape index: {}]
  %s4 = inlined_call_operand.hbm [shape: f32[16,32], index: 4, kind: output, shape index: {0}]
  %s5 = inlined_call_operand.hbm [shape: f32[2,8,128], index: 5, kind: output, shape index: {1}]
  %6 = xla_tuple %s4, %s5
  %s7 = sld [smem:[#allocation0]]
  $region57: #{tpu_custom_call.1} parent=0
    _
  %s9 = ssub.s32 1, %s7
  %s10 = scalar_select 0, %s9, %s7
  $region1: #{tpu_custom_call.1} parent=0
    #allocation2 [shape = 'u8[8192]{0}', space=vmem, size = 0x2000, scoped, tag = 'output window, operand 0']
    #allocation3 [shape = 's32[2]{0}', space=sflag, size = 0x8, scoped, tag = 'scoped memory for tpu_custom_call.1']
    #allocation4 [shape = 'u8[8192]{0}', space=vmem, size = 0x2000, scoped, tag = 'output window, operand 1']
    #allocation5 [shape = 's32[2]{0}', space=sflag, size = 0x8, scoped, tag = 'scoped memory for tpu_custom_call.1']
    %11 = vsyncpa [#allocation3], 0
    %s12 = scalar_lea.sflag [#allocation3], 1
    %13 = vsyncpa %s12, 0
    %14 = vsyncpa [#allocation5], 0
    %s15 = scalar_lea.sflag [#allocation5], 1
    %16 = vsyncpa %s15, 0
    loop: start=0, step=1, limit=4
    $region2: #{tpu_custom_call.1} parent=1 // loop_pre_header
      _
    $region3: #{tpu_custom_call.1} parent=1 // loop_header
      %s18 = sphi 0, %s22
      %p19 = scmp.ge.s32.totalorder %s18, 4
      %s28 = sphi 0, %s30
      %s31 = sphi 0, %s28
      %s32 = sphi 0, %s31
      %s48 = sphi 0, %s32
      %s52 = sphi 0, %s52
      %s54 = sphi 0, %s52
      %s55 = sphi 0, %s54
      %s69 = sphi 0, %s55
      %s73 = sphi 0, %s73
      %s75 = sphi 0, %s73
      %s76 = sphi 0, %s75
      %s90 = sphi 0, %s76
      %s94 = sphi 0, %s94
      %s96 = sphi 0, %s94
      %s97 = sphi 0, %s96
      %s111 = sphi 0, %s97
      %s117 = sphi 0, %s119
      %s120 = sphi 0, %s117
      %s121 = sphi 0, %s120
      %s137 = sphi 0, %s121
      %s143 = sphi 0, %s145
      %s146 = sphi 0, %s143
      %s147 = sphi 0, %s146
      %s163 = sphi 0, %s147
    $region4: #{tpu_custom_call.1} parent=1 // loop_header_branch
      %21 = sbr.rel (%p19) target = $region8
    $region5: #{tpu_custom_call.1} parent=1 // loop_body
      %s23 = ssub.s32 %s18, 1
      %s24 = ssub.s32 %s18, 2
      %s25 = sadd.s32 %s18, 1
      %s26 = ssub.s32 %s18, %s25
      %p27 = scmp.eq.s32.totalorder %s26, 0
      %s29 = sadd.s32 %s28, 1
      %s30 = scalar_select %p27, %s28, %s29
      %p33 = pneg %p27
      %p34 = scmp.eq.s32.totalorder %s18, 1
      %p35 = por %p33, %p34
      %p36 = scmp.ne.s32.totalorder %s28, %s31
      %p37 = scmp.eq.s32.totalorder %s18, 0
      %p38 = por %p36, %p37
      %p39 = scmp.ne.s32.totalorder %s28, %s31
      %p40 = scmp.eq.s32.totalorder %s23, 1
      %p41 = por %p39, %p40
      %p42 = scmp.ne.s32.totalorder %s31, %s32
      %p43 = scmp.eq.s32.totalorder %s23, 0
      %p44 = por %p42, %p43
      %p45 = scmp.ne.s32.totalorder %s31, %s32
      %p46 = scmp.eq.s32.totalorder %s24, 1
      %p47 = por %p45, %p46
      %p49 = scmp.ne.s32.totalorder %s32, %s48
      %p50 = scmp.eq.s32.totalorder %s24, 0
      %p51 = por %p49, %p50
      %s53 = sadd.s32 %s52, 1
      %p56 = scmp.eq.s32.totalorder %s18, 1
      %p57 = scmp.ne.s32.totalorder %s52, %s54
      %p58 = scmp.eq.s32.totalorder %s18, 0
      %p59 = por %p57, %p58
      %p60 = scmp.ne.s32.totalorder %s52, %s54
      %p61 = scmp.eq.s32.totalorder %s23, 1
      %p62 = por %p60, %p61
      %p63 = scmp.ne.s32.totalorder %s54, %s55
      %p64 = scmp.eq.s32.totalorder %s23, 0
      %p65 = por %p63, %p64
      %p66 = scmp.ne.s32.totalorder %s54, %s55
      %p67 = scmp.eq.s32.totalorder %s24, 1
      %p68 = por %p66, %p67
      %p70 = scmp.ne.s32.totalorder %s55, %s69
      %p71 = scmp.eq.s32.totalorder %s24, 0
      %p72 = por %p70, %p71
      %s74 = sadd.s32 %s73, 1
      %p77 = scmp.eq.s32.totalorder %s18, 1
      %p78 = scmp.ne.s32.totalorder %s73, %s75
      %p79 = scmp.eq.s32.totalorder %s18, 0
      %p80 = por %p78, %p79
      %p81 = scmp.ne.s32.totalorder %s73, %s75
      %p82 = scmp.eq.s32.totalorder %s23, 1
      %p83 = por %p81, %p82
      %p84 = scmp.ne.s32.totalorder %s75, %s76
      %p85 = scmp.eq.s32.totalorder %s23, 0
      %p86 = por %p84, %p85
      %p87 = scmp.ne.s32.totalorder %s75, %s76
      %p88 = scmp.eq.s32.totalorder %s24, 1
      %p89 = por %p87, %p88
      %p91 = scmp.ne.s32.totalorder %s76, %s90
      %p92 = scmp.eq.s32.totalorder %s24, 0
      %p93 = por %p91, %p92
      %s95 = sadd.s32 %s94, 1
      %p98 = scmp.eq.s32.totalorder %s18, 1
      %p99 = scmp.ne.s32.totalorder %s94, %s96
      %p100 = scmp.eq.s32.totalorder %s18, 0
      %p101 = por %p99, %p100
      %p102 = scmp.ne.s32.totalorder %s94, %s96
      %p103 = scmp.eq.s32.totalorder %s23, 1
      %p104 = por %p102, %p103
      %p105 = scmp.ne.s32.totalorder %s96, %s97
      %p106 = scmp.eq.s32.totalorder %s23, 0
      %p107 = por %p105, %p106
      %p108 = scmp.ne.s32.totalorder %s96, %s97
      %p109 = scmp.eq.s32.totalorder %s24, 1
      %p110 = por %p108, %p109
      %p112 = scmp.ne.s32.totalorder %s97, %s111
      %p113 = scmp.eq.s32.totalorder %s24, 0
      %p114 = por %p112, %p113
      %s115 = ssub.s32 %s18, %s25
      %p116 = scmp.eq.s32.totalorder %s115, 0
      %s118 = sadd.s32 %s117, 1
      %s119 = scalar_select %p116, %s117, %s118
      %p122 = pneg %p116
      %p123 = scmp.eq.s32.totalorder %s18, 1
      %p124 = por %p122, %p123
      %p125 = scmp.ne.s32.totalorder %s117, %s120
      %p126 = scmp.eq.s32.totalorder %s18, 0
      %p127 = por %p125, %p126
      %p128 = scmp.ne.s32.totalorder %s117, %s120
      %p129 = scmp.eq.s32.totalorder %s23, 1
      %p130 = por %p128, %p129
      %p131 = scmp.ne.s32.totalorder %s120, %s121
      %p132 = scmp.eq.s32.totalorder %s23, 0
      %p133 = por %p131, %p132
      %p134 = scmp.ne.s32.totalorder %s120, %s121
      %p135 = scmp.eq.s32.totalorder %s24, 1
      %p136 = por %p134, %p135
      %p138 = scmp.ne.s32.totalorder %s121, %s137
      %p139 = scmp.eq.s32.totalorder %s24, 0
      %p140 = por %p138, %p139
      %s141 = ssub.s32 %s18, %s25
      %p142 = scmp.eq.s32.totalorder %s141, 0
      %s144 = sadd.s32 %s143, 1
      %s145 = scalar_select %p142, %s143, %s144
      %p148 = pneg %p142
      %p149 = scmp.eq.s32.totalorder %s18, 1
      %p150 = por %p148, %p149
      %p151 = scmp.ne.s32.totalorder %s143, %s146
      %p152 = scmp.eq.s32.totalorder %s18, 0
      %p153 = por %p151, %p152
      %p154 = scmp.ne.s32.totalorder %s143, %s146
      %p155 = scmp.eq.s32.totalorder %s23, 1
      %p156 = por %p154, %p155
      %p157 = scmp.ne.s32.totalorder %s146, %s147
      %p158 = scmp.eq.s32.totalorder %s23, 0
      %p159 = por %p157, %p158
      %p160 = scmp.ne.s32.totalorder %s146, %s147
      %p161 = scmp.eq.s32.totalorder %s24, 1
      %p162 = por %p160, %p161
      %p164 = scmp.ne.s32.totalorder %s147, %s163
      %p165 = scmp.eq.s32.totalorder %s24, 0
      %p166 = por %p164, %p165
      %p167 = scmp.le.s32.totalorder 1, %s18
      %p168 = scmp.lt.s32.totalorder %s18, 3
      %p169 = pnand %p167, %p168
      %p170 = pneg %p169
      // Predicated region
      $region9: #{tpu_custom_call.1} parent=5 // pred_check
        _
      $region10: #{tpu_custom_call.1} parent=5 // pred_check_branch
        %172 = sbr.rel (%p169) target = $region12
      $region11: #{tpu_custom_call.1} parent=5 // pred_region
        %s173 = ssub.s32 %s18, 1
        // Predicated region
        $region13: #{tpu_custom_call.1} parent=11 // pred_check
          %p174 = pneg %p65
        $region14: #{tpu_custom_call.1} parent=11 // pred_check_branch
          %176 = sbr.rel (%p174) target = $region16
        $region15: #{tpu_custom_call.1} parent=11 // pred_region
          _
        $region16: #{tpu_custom_call.1} parent=11 // pred_fallthru
          _
        // Predicated region
        $region17: #{tpu_custom_call.1} parent=11 // pred_check
          %p177 = pneg %p86
        $region18: #{tpu_custom_call.1} parent=11 // pred_check_branch
          %179 = sbr.rel (%p177) target = $region20
        $region19: #{tpu_custom_call.1} parent=11 // pred_region
          _
        $region20: #{tpu_custom_call.1} parent=11 // pred_fallthru
          _
        // Predicated region
        $region21: #{tpu_custom_call.1} parent=11 // pred_check
          %p180 = pneg %p107
        $region22: #{tpu_custom_call.1} parent=11 // pred_check_branch
          %182 = sbr.rel (%p180) target = $region24
        $region23: #{tpu_custom_call.1} parent=11 // pred_region
          _
        $region24: #{tpu_custom_call.1} parent=11 // pred_fallthru
          _
      $region12: #{tpu_custom_call.1} parent=5 // pred_fallthru
        _
      %p183 = scmp.lt.s32.totalorder %s18, 2
      // Predicated region
      $region25: #{tpu_custom_call.1} parent=5 // pred_check
        %p184 = pneg %p183
      $region26: #{tpu_custom_call.1} parent=5 // pred_check_branch
        %186 = sbr.rel (%p184) target = $region28
      $region27: #{tpu_custom_call.1} parent=5 // pred_region
        // Predicated region
        $region29: #{tpu_custom_call.1} parent=27 // pred_check
          %p187 = pneg %p38
        $region30: #{tpu_custom_call.1} parent=27 // pred_check_branch
          %189 = sbr.rel (%p187) target = $region32
        $region31: #{tpu_custom_call.1} parent=27 // pred_region
          %p190 = scmp.lt.s32.totalorder %s18, 1
          %s191 = scalar_select %p190, %s18, 1
          %s192 = smul.addr %s191, 8
          %s193 = scalar_lea.vmem %s0, %s192
        $region32: #{tpu_custom_call.1} parent=27 // pred_fallthru
          _
      $region28: #{tpu_custom_call.1} parent=5 // pred_fallthru
        _
      %p194 = scmp.le.s32.totalorder 1, %s18
      %p195 = scmp.lt.s32.totalorder %s18, 3
      %p196 = pnand %p194, %p195
      %p197 = pneg %p196
      // Predicated region
      $region33: #{tpu_custom_call.1} parent=5 // pred_check
        _
      $region34: #{tpu_custom_call.1} parent=5 // pred_check_branch
        %199 = sbr.rel (%p196) target = $region36
      $region35: #{tpu_custom_call.1} parent=5 // pred_region
        %s200 = ssub.s32 %s18, 1
        %p201 = scmp.lt.s32.totalorder %s23, 1
        %s202 = scalar_select %p201, %s23, 1
        %s203 = smul.addr %s202, 8
        %s204 = scalar_lea.vmem %s0, %s203
        %p205 = pneg %p44
        %p206 = pneg %p41
        %p207 = pneg %p65
        %p208 = pneg %p62
        %p209 = pneg %p86
        %p210 = pneg %p83
        %p211 = pneg %p107
        %p212 = pneg %p104
        %p213 = pneg %p133
        %p214 = pneg %p130
        %s215 = sand.u32 %s120, 1
        %s216 = scalar_lea.sflag [#allocation3], %s215
        %s217 = sand.u32 %s120, 1
        %s218 = smul.addr %s217, 8
        %s219 = scalar_lea.vmem [#allocation2], %s218
        %p220 = pneg %p159
        %p221 = pneg %p156
        %s222 = sand.u32 %s146, 1
        %s223 = scalar_lea.sflag [#allocation5], %s222
        %s224 = sand.u32 %s146, 1
        %s225 = smul.addr %s224, 8
        %s226 = scalar_lea.vmem [#allocation4], %s225
        %p227 = scmp.lt.s32.totalorder %s23, 1
        %s228 = scalar_select %p227, %s23, 1
        %s229 = smul.addr %s228, 8
        %s230 = scalar_lea.vmem %s0, %s229
        %v231 = vld [vmem:[%s230] sm:$0xff]
        %v232 = vlaneseq
        %v233 = vand.u32 %v232, 127
        %v234 = vld [vmem:[%s1] sm:$0xff]
        %v235 = vld [vmem:[%s1 + $0x8] sm:$0xff]
        %v236 = vld [vmem:[%s1 + $0x10] sm:$0xff]
        %v237 = vld [vmem:[%s1 + $0x18] sm:$0xff]
        %v238 = vld [vmem:[%s2] sm:$0xff]
        %v239 = vld [vmem:[%s2 + $0x8] sm:$0xff]
        %v240 = vld [vmem:[%s2 + $0x10] sm:$0xff]
        %v241 = vld [vmem:[%s2 + $0x18] sm:$0xff]
        %v242 = vld [vmem:[%s2 + $0x20] sm:$0xff]
        %v243 = vld [vmem:[%s2 + $0x28] sm:$0xff]
        %v244 = vld [vmem:[%s2 + $0x30] sm:$0xff]
        %v245 = vld [vmem:[%s2 + $0x38] sm:$0xff]
        %v246 = vld [vmem:[%s2 + $0x40] sm:$0xff]
        %v247 = vld [vmem:[%s2 + $0x48] sm:$0xff]
        %v248 = vld [vmem:[%s2 + $0x50] sm:$0xff]
        %v249 = vld [vmem:[%s2 + $0x58] sm:$0xff]
        %v250 = vld [vmem:[%s2 + $0x60] sm:$0xff]
        %v251 = vld [vmem:[%s2 + $0x68] sm:$0xff]
        %v252 = vld [vmem:[%s2 + $0x70] sm:$0xff]
        %v253 = vld [vmem:[%s2 + $0x78] sm:$0xff]
        %v254 = vld [vmem:[%s3] sm:$0x1]
        %vm255 = vcmask 261120
        %v257 = vsel %vm255, %v231, 0
        %259 = vmatprep.subr.mxu0 0.0
        %260 = vmatpush1.msra.mxu0 %v234
        %261 = vmatprep.subr.mxu0 0.0
        %262 = vmatpush1.msra.mxu0 %v235
        %263 = vmatprep.subr.mxu0 0.0
        %264 = vmatpush1.msra.mxu0 %v236
        %265 = vmatprep.subr.mxu0 0.0
        %266 = vmatpush1.msra.mxu0 %v237
        %267 = vmatprep.subr.mxu0 0.0
        %268 = vmatpush1.msra.mxu0 0.0
        %269 = vmatprep.subr.mxu0 0.0
        %270 = vmatpush1.msra.mxu0 0.0
        %271 = vmatprep.subr.mxu0 0.0
        %272 = vmatpush1.msra.mxu0 0.0
        %273 = vmatprep.subr.mxu0 0.0
        %274 = vmatpush1.msra.mxu0 0.0
        %275 = vmatprep.subr.mxu0 0.0
        %276 = vmatpush1.msra.mxu0 0.0
        %277 = vmatprep.subr.mxu0 0.0
        %278 = vmatpush1.msra.mxu0 0.0
        %279 = vmatprep.subr.mxu0 0.0
        %280 = vmatpush1.msra.mxu0 0.0
        %281 = vmatprep.subr.mxu0 0.0
        %282 = vmatpush1.msra.mxu0 0.0
        %283 = vmatprep.subr.mxu0 0.0
        %284 = vmatpush1.msra.mxu0 0.0
        %285 = vmatprep.subr.mxu0 0.0
        %286 = vmatpush1.msra.mxu0 0.0
        %287 = vmatprep.subr.mxu0 0.0
        %288 = vmatpush1.msra.mxu0 0.0
        %289 = vmatprep.subr.mxu0 0.0
        %290 = vmatpush1.msra.mxu0 0.0
        %291 = vmatprep.subr.mxu0 0.0
        %292 = vmatpush1.msra.mxu0 0.0
        %293 = vmatprep.subr.mxu0 0.0
        %294 = vmatpush1.msra.mxu0 0.0
        %295 = vmatprep.subr.mxu0 0.0
        %296 = vmatpush1.msra.mxu0 0.0
        %297 = vmatprep.subr.mxu0 0.0
        %298 = vmatpush1.msra.mxu0 0.0
        %299 = vmatprep.subr.mxu0 0.0
        %300 = vmatpush1.msra.mxu0 0.0
        %301 = vmatprep.subr.mxu0 0.0
        %302 = vmatpush1.msra.mxu0 0.0
        %303 = vmatprep.subr.mxu0 0.0
        %304 = vmatpush1.msra.mxu0 0.0
        %305 = vmatprep.subr.mxu0 0.0
        %306 = vmatpush1.msra.mxu0 0.0
        %307 = vmatprep.subr.mxu0 0.0
        %308 = vmatpush1.msra.mxu0 0.0
        %309 = vmatprep.subr.mxu0 0.0
        %310 = vmatpush1.msra.mxu0 0.0
        %311 = vmatprep.subr.mxu0 0.0
        %312 = vmatpush1.msra.mxu0 0.0
        %313 = vmatprep.subr.mxu0 0.0
        %314 = vmatpush1.msra.mxu0 0.0
        %315 = vmatprep.subr.mxu0 0.0
        %316 = vmatpush1.msra.mxu0 0.0
        %317 = vmatprep.subr.mxu0 0.0
        %318 = vmatpush1.msra.mxu0 0.0
        %319 = vmatprep.subr.mxu0 0.0
        %320 = vmatpush1.msra.mxu0 0.0
        %321 = vmatprep.subr.mxu0 0.0
        %322 = vmatpush1.msra.mxu0 0.0
        %323 = vmatprep.mubr.f32.mxu0 0.0
        %324 = vmatmul.mubr.f32.gmra.mrb[0].mxu0 %v257
        %v325 = vpop.f32.mrb[0].mxu0
        %v326 = vadd.f32 0.0, %v325
        %v327 = vpop.f32.mrb[0].mxu0
        %328 = vdwg.mxu0
        %v330 = vlaneseq
        %v331 = vshrl.u32 %v330, 7
        %v332 = vsub.s32 0, %v331
        %v333 = vrot.slane %v254, %v332
        %v335 = vsub.f32 %v333, %v326
        %336 = vmin.xlane.f32.xlu0 %v335
        %v337 = vpop.xlane.xlu0 %336
        %vm338 = vcmp.le.f32.partialorder %v335, %v337
        %v339 = vsel %vm338, %v233, 128
        %v340 = vand.u32 %v339, 65535
        %v341 = vshra.s32 %v339, 16
        %v342 = vcvt.s32.f32 %v340
        %v343 = vcvt.s32.f32 %v341
        %344 = vmin.xlane.f32.xlu0 %v343
        %v345 = vpop.xlane.xlu0 %344
        %vm346 = vcmp.eq.f32.partialorder %v343, %v345
        %v347 = vsel %vm346, %v342, inf
        %348 = vmin.xlane.f32.xlu0 %v347
        %v349 = vpop.xlane.xlu0 %348
        %v350 = vcvt.f32.s32 %v349
        %v351 = vcvt.f32.s32 %v345
        %v352 = vshll.u32 %v351, 16
        %v353 = vadd.s32 %v352, %v350
        %vm354 = vcmp.eq.s32.totalorder %v233, %v353
        %v355 = vsel %vm354, 1, 0
        %v356 = vcvt.s32.f32 %v355
        %357 = vmatprep.subr.mxu0 0.0
        %358 = vmatpush1.msra.mxu0 %v238
        %359 = vmatprep.subr.mxu0 0.0
        %360 = vmatpush1.msra.mxu0 %v239
        %361 = vmatprep.subr.mxu0 0.0
        %362 = vmatpush1.msra.mxu0 %v240
        %363 = vmatprep.subr.mxu0 0.0
        %364 = vmatpush1.msra.mxu0 %v241
        %365 = vmatprep.subr.mxu0 0.0
        %366 = vmatpush1.msra.mxu0 %v242
        %367 = vmatprep.subr.mxu0 0.0
        %368 = vmatpush1.msra.mxu0 %v243
        %369 = vmatprep.subr.mxu0 0.0
        %370 = vmatpush1.msra.mxu0 %v244
        %371 = vmatprep.subr.mxu0 0.0
        %372 = vmatpush1.msra.mxu0 %v245
        %373 = vmatprep.subr.mxu0 0.0
        %374 = vmatpush1.msra.mxu0 %v246
        %375 = vmatprep.subr.mxu0 0.0
        %376 = vmatpush1.msra.mxu0 %v247
        %377 = vmatprep.subr.mxu0 0.0
        %378 = vmatpush1.msra.mxu0 %v248
        %379 = vmatprep.subr.mxu0 0.0
        %380 = vmatpush1.msra.mxu0 %v249
        %381 = vmatprep.subr.mxu0 0.0
        %382 = vmatpush1.msra.mxu0 %v250
        %383 = vmatprep.subr.mxu0 0.0
        %384 = vmatpush1.msra.mxu0 %v251
        %385 = vmatprep.subr.mxu0 0.0
        %386 = vmatpush1.msra.mxu0 %v252
        %387 = vmatprep.subr.mxu0 0.0
        %388 = vmatpush1.msra.mxu0 %v253
        %389 = vmatprep.subr.mxu0 0.0
        %390 = vmatpush1.msra.mxu0 0.0
        %391 = vmatprep.subr.mxu0 0.0
        %392 = vmatpush1.msra.mxu0 0.0
        %393 = vmatprep.subr.mxu0 0.0
        %394 = vmatpush1.msra.mxu0 0.0
        %395 = vmatprep.subr.mxu0 0.0
        %396 = vmatpush1.msra.mxu0 0.0
        %397 = vmatprep.subr.mxu0 0.0
        %398 = vmatpush1.msra.mxu0 0.0
        %399 = vmatprep.subr.mxu0 0.0
        %400 = vmatpush1.msra.mxu0 0.0
        %401 = vmatprep.subr.mxu0 0.0
        %402 = vmatpush1.msra.mxu0 0.0
        %403 = vmatprep.subr.mxu0 0.0
        %404 = vmatpush1.msra.mxu0 0.0
        %405 = vmatprep.subr.mxu0 0.0
        %406 = vmatpush1.msra.mxu0 0.0
        %407 = vmatprep.subr.mxu0 0.0
        %408 = vmatpush1.msra.mxu0 0.0
        %409 = vmatprep.subr.mxu0 0.0
        %410 = vmatpush1.msra.mxu0 0.0
        %411 = vmatprep.subr.mxu0 0.0
        %412 = vmatpush1.msra.mxu0 0.0
        %413 = vmatprep.subr.mxu0 0.0
        %414 = vmatpush1.msra.mxu0 0.0
        %415 = vmatprep.subr.mxu0 0.0
        %416 = vmatpush1.msra.mxu0 0.0
        %417 = vmatprep.subr.mxu0 0.0
        %418 = vmatpush1.msra.mxu0 0.0
        %419 = vmatprep.subr.mxu0 0.0
        %420 = vmatpush1.msra.mxu0 0.0
        %421 = vmatprep.mubr.f32.mxu0 0.0
        %422 = vmatmul.mubr.f32.gmra.mrb[0].mxu0 %v356
        %v423 = vpop.f32.mrb[0].mxu0
        %v424 = vadd.f32 0.0, %v423
        %v425 = vpop.f32.mrb[0].mxu0
        %426 = vdwg.mxu0
        %v427 = vsub.f32 %v424, %v231
        %v428 = vmul.f32 %v427, %v427
        %v429 = vsel %vm255, %v428, 0.0
        %430 = vadd.xlane.f32.xlu0 %v429
        %v431 = vpop.xlane.xlu0 %430
        %v432 = vrot.slane %v431, 4
        %v433 = vadd.f32 %v431, %v432
        %v434 = vrot.slane %v433, 2
        %v435 = vadd.f32 %v433, %v434
        %v436 = vrot.slane %v435, 1
        %v437 = vadd.f32 %v435, %v436
        %s438 = vtos %v437
        %s439 = sadd.f32 %s438, 0.0
        %v440 = vadd.f32 %v424, 0.0
        %v441 = vsub.f32 %v231, %v424
        %s442 = scalar_lea.vmem %s1, 32
        %v443 = vld [vmem:[%s442] sm:$0xff]
        %v444 = vld [vmem:[%s442 + $0x8] sm:$0xff]
        %v445 = vld [vmem:[%s442 + $0x10] sm:$0xff]
        %v446 = vld [vmem:[%s442 + $0x18] sm:$0xff]
        %s447 = scalar_lea.vmem %s2, 128
        %v448 = vld [vmem:[%s447] sm:$0xff]
        %v449 = vld [vmem:[%s447 + $0x8] sm:$0xff]
        %v450 = vld [vmem:[%s447 + $0x10] sm:$0xff]
        %v451 = vld [vmem:[%s447 + $0x18] sm:$0xff]
        %v452 = vld [vmem:[%s447 + $0x20] sm:$0xff]
        %v453 = vld [vmem:[%s447 + $0x28] sm:$0xff]
        %v454 = vld [vmem:[%s447 + $0x30] sm:$0xff]
        %v455 = vld [vmem:[%s447 + $0x38] sm:$0xff]
        %v456 = vld [vmem:[%s447 + $0x40] sm:$0xff]
        %v457 = vld [vmem:[%s447 + $0x48] sm:$0xff]
        %v458 = vld [vmem:[%s447 + $0x50] sm:$0xff]
        %v459 = vld [vmem:[%s447 + $0x58] sm:$0xff]
        %v460 = vld [vmem:[%s447 + $0x60] sm:$0xff]
        %v461 = vld [vmem:[%s447 + $0x68] sm:$0xff]
        %v462 = vld [vmem:[%s447 + $0x70] sm:$0xff]
        %v463 = vld [vmem:[%s447 + $0x78] sm:$0xff]
        %s464 = scalar_lea.vmem %s3, 1
        %v465 = vld [vmem:[%s464] sm:$0x1]
        %v467 = vsel %vm255, %v441, 0
        %469 = vmatprep.subr.mxu0 0.0
        %470 = vmatpush1.msra.mxu0 %v443
        %471 = vmatprep.subr.mxu0 0.0
        %472 = vmatpush1.msra.mxu0 %v444
        %473 = vmatprep.subr.mxu0 0.0
        %474 = vmatpush1.msra.mxu0 %v445
        %475 = vmatprep.subr.mxu0 0.0
        %476 = vmatpush1.msra.mxu0 %v446
        %477 = vmatprep.subr.mxu0 0.0
        %478 = vmatpush1.msra.mxu0 0.0
        %479 = vmatprep.subr.mxu0 0.0
        %480 = vmatpush1.msra.mxu0 0.0
        %481 = vmatprep.subr.mxu0 0.0
        %482 = vmatpush1.msra.mxu0 0.0
        %483 = vmatprep.subr.mxu0 0.0
        %484 = vmatpush1.msra.mxu0 0.0
        %485 = vmatprep.subr.mxu0 0.0
        %486 = vmatpush1.msra.mxu0 0.0
        %487 = vmatprep.subr.mxu0 0.0
        %488 = vmatpush1.msra.mxu0 0.0
        %489 = vmatprep.subr.mxu0 0.0
        %490 = vmatpush1.msra.mxu0 0.0
        %491 = vmatprep.subr.mxu0 0.0
        %492 = vmatpush1.msra.mxu0 0.0
        %493 = vmatprep.subr.mxu0 0.0
        %494 = vmatpush1.msra.mxu0 0.0
        %495 = vmatprep.subr.mxu0 0.0
        %496 = vmatpush1.msra.mxu0 0.0
        %497 = vmatprep.subr.mxu0 0.0
        %498 = vmatpush1.msra.mxu0 0.0
        %499 = vmatprep.subr.mxu0 0.0
        %500 = vmatpush1.msra.mxu0 0.0
        %501 = vmatprep.subr.mxu0 0.0
        %502 = vmatpush1.msra.mxu0 0.0
        %503 = vmatprep.subr.mxu0 0.0
        %504 = vmatpush1.msra.mxu0 0.0
        %505 = vmatprep.subr.mxu0 0.0
        %506 = vmatpush1.msra.mxu0 0.0
        %507 = vmatprep.subr.mxu0 0.0
        %508 = vmatpush1.msra.mxu0 0.0
        %509 = vmatprep.subr.mxu0 0.0
        %510 = vmatpush1.msra.mxu0 0.0
        %511 = vmatprep.subr.mxu0 0.0
        %512 = vmatpush1.msra.mxu0 0.0
        %513 = vmatprep.subr.mxu0 0.0
        %514 = vmatpush1.msra.mxu0 0.0
        %515 = vmatprep.subr.mxu0 0.0
        %516 = vmatpush1.msra.mxu0 0.0
        %517 = vmatprep.subr.mxu0 0.0
        %518 = vmatpush1.msra.mxu0 0.0
        %519 = vmatprep.subr.mxu0 0.0
        %520 = vmatpush1.msra.mxu0 0.0
        %521 = vmatprep.subr.mxu0 0.0
        %522 = vmatpush1.msra.mxu0 0.0
        %523 = vmatprep.subr.mxu0 0.0
        %524 = vmatpush1.msra.mxu0 0.0
        %525 = vmatprep.subr.mxu0 0.0
        %526 = vmatpush1.msra.mxu0 0.0
        %527 = vmatprep.subr.mxu0 0.0
        %528 = vmatpush1.msra.mxu0 0.0
        %529 = vmatprep.subr.mxu0 0.0
        %530 = vmatpush1.msra.mxu0 0.0
        %531 = vmatprep.subr.mxu0 0.0
        %532 = vmatpush1.msra.mxu0 0.0
        %533 = vmatprep.mubr.f32.mxu0 0.0
        %534 = vmatmul.mubr.f32.gmra.mrb[0].mxu0 %v467
        %v535 = vpop.f32.mrb[0].mxu0
        %v536 = vadd.f32 0.0, %v535
        %v537 = vpop.f32.mrb[0].mxu0
        %538 = vdwg.mxu0
        %v540 = vlaneseq
        %v541 = vshrl.u32 %v540, 7
        %v542 = vsub.s32 0, %v541
        %v543 = vrot.slane %v465, %v542
        %v545 = vsub.f32 %v543, %v536
        %546 = vmin.xlane.f32.xlu0 %v545
        %v547 = vpop.xlane.xlu0 %546
        %vm548 = vcmp.le.f32.partialorder %v545, %v547
        %v549 = vsel %vm548, %v233, 128
        %v550 = vand.u32 %v549, 65535
        %v551 = vshra.s32 %v549, 16
        %v552 = vcvt.s32.f32 %v550
        %v553 = vcvt.s32.f32 %v551
        %554 = vmin.xlane.f32.xlu0 %v553
        %v555 = vpop.xlane.xlu0 %554
        %vm556 = vcmp.eq.f32.partialorder %v553, %v555
        %v557 = vsel %vm556, %v552, inf
        %558 = vmin.xlane.f32.xlu0 %v557
        %v559 = vpop.xlane.xlu0 %558
        %v560 = vcvt.f32.s32 %v559
        %v561 = vcvt.f32.s32 %v555
        %v562 = vshll.u32 %v561, 16
        %v563 = vadd.s32 %v562, %v560
        %vm564 = vcmp.eq.s32.totalorder %v233, %v563
        %v565 = vsel %vm564, 1, 0
        %v566 = vcvt.s32.f32 %v565
        %567 = vmatprep.subr.mxu0 0.0
        %568 = vmatpush1.msra.mxu0 %v448
        %569 = vmatprep.subr.mxu0 0.0
        %570 = vmatpush1.msra.mxu0 %v449
        %571 = vmatprep.subr.mxu0 0.0
        %572 = vmatpush1.msra.mxu0 %v450
        %573 = vmatprep.subr.mxu0 0.0
        %574 = vmatpush1.msra.mxu0 %v451
        %575 = vmatprep.subr.mxu0 0.0
        %576 = vmatpush1.msra.mxu0 %v452
        %577 = vmatprep.subr.mxu0 0.0
        %578 = vmatpush1.msra.mxu0 %v453
        %579 = vmatprep.subr.mxu0 0.0
        %580 = vmatpush1.msra.mxu0 %v454
        %581 = vmatprep.subr.mxu0 0.0
        %582 = vmatpush1.msra.mxu0 %v455
        %583 = vmatprep.subr.mxu0 0.0
        %584 = vmatpush1.msra.mxu0 %v456
        %585 = vmatprep.subr.mxu0 0.0
        %586 = vmatpush1.msra.mxu0 %v457
        %587 = vmatprep.subr.mxu0 0.0
        %588 = vmatpush1.msra.mxu0 %v458
        %589 = vmatprep.subr.mxu0 0.0
        %590 = vmatpush1.msra.mxu0 %v459
        %591 = vmatprep.subr.mxu0 0.0
        %592 = vmatpush1.msra.mxu0 %v460
        %593 = vmatprep.subr.mxu0 0.0
        %594 = vmatpush1.msra.mxu0 %v461
        %595 = vmatprep.subr.mxu0 0.0
        %596 = vmatpush1.msra.mxu0 %v462
        %597 = vmatprep.subr.mxu0 0.0
        %598 = vmatpush1.msra.mxu0 %v463
        %599 = vmatprep.subr.mxu0 0.0
        %600 = vmatpush1.msra.mxu0 0.0
        %601 = vmatprep.subr.mxu0 0.0
        %602 = vmatpush1.msra.mxu0 0.0
        %603 = vmatprep.subr.mxu0 0.0
        %604 = vmatpush1.msra.mxu0 0.0
        %605 = vmatprep.subr.mxu0 0.0
        %606 = vmatpush1.msra.mxu0 0.0
        %607 = vmatprep.subr.mxu0 0.0
        %608 = vmatpush1.msra.mxu0 0.0
        %609 = vmatprep.subr.mxu0 0.0
        %610 = vmatpush1.msra.mxu0 0.0
        %611 = vmatprep.subr.mxu0 0.0
        %612 = vmatpush1.msra.mxu0 0.0
        %613 = vmatprep.subr.mxu0 0.0
        %614 = vmatpush1.msra.mxu0 0.0
        %615 = vmatprep.subr.mxu0 0.0
        %616 = vmatpush1.msra.mxu0 0.0
        %617 = vmatprep.subr.mxu0 0.0
        %618 = vmatpush1.msra.mxu0 0.0
        %619 = vmatprep.subr.mxu0 0.0
        %620 = vmatpush1.msra.mxu0 0.0
        %621 = vmatprep.subr.mxu0 0.0
        %622 = vmatpush1.msra.mxu0 0.0
        %623 = vmatprep.subr.mxu0 0.0
        %624 = vmatpush1.msra.mxu0 0.0
        %625 = vmatprep.subr.mxu0 0.0
        %626 = vmatpush1.msra.mxu0 0.0
        %627 = vmatprep.subr.mxu0 0.0
        %628 = vmatpush1.msra.mxu0 0.0
        %629 = vmatprep.subr.mxu0 0.0
        %630 = vmatpush1.msra.mxu0 0.0
        %631 = vmatprep.mubr.f32.mxu0 0.0
        %632 = vmatmul.mubr.f32.gmra.mrb[0].mxu0 %v566
        %v633 = vpop.f32.mrb[0].mxu0
        %v634 = vadd.f32 0.0, %v633
        %v635 = vpop.f32.mrb[0].mxu0
        %636 = vdwg.mxu0
        %v637 = vsub.f32 %v634, %v441
        %v638 = vmul.f32 %v637, %v637
        %v639 = vsel %vm255, %v638, 0.0
        %640 = vadd.xlane.f32.xlu0 %v639
        %v641 = vpop.xlane.xlu0 %640
        %v642 = vrot.slane %v641, 4
        %v643 = vadd.f32 %v641, %v642
        %v644 = vrot.slane %v643, 2
        %v645 = vadd.f32 %v643, %v644
        %v646 = vrot.slane %v645, 1
        %v647 = vadd.f32 %v645, %v646
        %s648 = vtos %v647
        %s649 = sadd.f32 %s439, %s648
        %v650 = vadd.f32 %v440, %v634
        %651 = vst.msk [vmem:[%s219] sm:$0xff] %vm255, %v650
        %s652 = sadd.f32 %s649, 0.0
        %s653 = smul.f32 %s652, 0.0024414063
        %v654 = vstv %s653
        %655 = vst [vmem:[%s226] sm:$0xff] %v654
        %s656 = sand.u32 %s120, 1
        %s657 = scalar_lea.sflag [#allocation3], %s656
        %s658 = sand.u32 %s120, 1
        %s659 = smul.addr %s658, 8
        %s660 = scalar_lea.vmem [#allocation2], %s659
        %s661 = sand.u32 %s146, 1
        %s662 = scalar_lea.sflag [#allocation5], %s661
        %s663 = sand.u32 %s146, 1
        %s664 = smul.addr %s663, 8
        %s665 = scalar_lea.vmem [#allocation4], %s664
        // Predicated region
        $region37: #{tpu_custom_call.1} parent=35 // pred_check
          %p666 = pneg %p130
        $region38: #{tpu_custom_call.1} parent=35 // pred_check_branch
          %668 = sbr.rel (%p666) target = $region40
        $region39: #{tpu_custom_call.1} parent=35 // pred_region
          %s670 = ssub.s32 128, 128
          %671 = vsyncadd %s657, %s670
          %s672 = smul.addr %s23, 128
          %s673 = scalar_lea.hbm %s4, %s672
          %s675 = sshll.u32 %s660, 4
          %s676 = int_to_ptr.vmem [resolvable:$true] %s675
          %678 = dma.vmem_to_hbm [thread:$0]  %s676, 128, %s673, %s657
        $region40: #{tpu_custom_call.1} parent=35 // pred_fallthru
          _
        // Predicated region
        $region41: #{tpu_custom_call.1} parent=35 // pred_check
          %p679 = pneg %p156
        $region42: #{tpu_custom_call.1} parent=35 // pred_check_branch
          %681 = sbr.rel (%p679) target = $region44
        $region43: #{tpu_custom_call.1} parent=35 // pred_region
          %s683 = ssub.s32 128, 128
          %684 = vsyncadd %s662, %s683
          %s685 = smul.addr %s23, 128
          %s686 = scalar_lea.hbm %s5, %s685
          %s688 = sshll.u32 %s665, 4
          %s689 = int_to_ptr.vmem [resolvable:$true] %s688
          %691 = dma.vmem_to_hbm [thread:$0]  %s689, 128, %s686, %s662
        $region44: #{tpu_custom_call.1} parent=35 // pred_fallthru
          _
      $region36: #{tpu_custom_call.1} parent=5 // pred_fallthru
        _
      %p692 = scmp.le.s32.totalorder 2, %s18
      // Predicated region
      $region45: #{tpu_custom_call.1} parent=5 // pred_check
        %p693 = pneg %p692
      $region46: #{tpu_custom_call.1} parent=5 // pred_check_branch
        %695 = sbr.rel (%p693) target = $region48
      $region47: #{tpu_custom_call.1} parent=5 // pred_region
        %s696 = ssub.s32 %s18, 2
        // Predicated region
        $region49: #{tpu_custom_call.1} parent=47 // pred_check
          %p697 = pneg %p136
        $region50: #{tpu_custom_call.1} parent=47 // pred_check_branch
          %699 = sbr.rel (%p697) target = $region52
        $region51: #{tpu_custom_call.1} parent=47 // pred_region
          %s700 = sand.u32 %s121, 1
          %s701 = scalar_lea.sflag [#allocation3], %s700
          %s702 = sand.u32 %s121, 1
          %s703 = smul.addr %s702, 8
          %s704 = scalar_lea.vmem [#allocation2], %s703
          %705 = dma.done %s701, 128
        $region52: #{tpu_custom_call.1} parent=47 // pred_fallthru
          _
        // Predicated region
        $region53: #{tpu_custom_call.1} parent=47 // pred_check
          %p706 = pneg %p162
        $region54: #{tpu_custom_call.1} parent=47 // pred_check_branch
          %708 = sbr.rel (%p706) target = $region56
        $region55: #{tpu_custom_call.1} parent=47 // pred_region
          %s709 = sand.u32 %s147, 1
          %s710 = scalar_lea.sflag [#allocation5], %s709
          %s711 = sand.u32 %s147, 1
          %s712 = smul.addr %s711, 8
          %s713 = scalar_lea.vmem [#allocation4], %s712
          %714 = dma.done %s710, 128
        $region56: #{tpu_custom_call.1} parent=47 // pred_fallthru
          _
      $region48: #{tpu_custom_call.1} parent=5 // pred_fallthru
        _
    $region6: #{tpu_custom_call.1} parent=1 // loop_footer
      %s22 = sadd.s32 1, %s18
    $region7: #{tpu_custom_call.1} parent=1 // loop_footer_branch
      %17 = sbr.rel target = $region3
    $region8: #{tpu_custom_call.1} parent=1 // loop_exit
      _
    %715 = vsyncpa [#allocation3], 1
    %s716 = scalar_lea.sflag [#allocation3], 1
    %717 = vsyncpa %s716, 1
    %718 = vsyncpa [#allocation5], 1
    %s719 = scalar_lea.sflag [#allocation5], 1
    %720 = vsyncpa %s719, 1

</llo_original>
